<compile_context>
chip_gen: v6e
topology: v6e:2x2x1
jax: 0.10.0
libtpu: 0.0.40
codegen_flags: <defaults>
</compile_context>

<pallas_src>
import jax
import jax.numpy as jnp
from jax import lax
from jax.experimental import pallas as pl
from jax.experimental.pallas import tpu as pltpu


def _round_up(x, m):
    return (x + m - 1) // m * m


def mlp_kernel(x_ref, w1_ref, b1_ref, w2_ref, b2_ref, w3_ref, b3_ref, o_ref):
    """Feature-major compute: batch on the lane axis.

    x_ref  [tile_n, 6]   (natural PyTorch layout)
    w1_ref [21, 6]  b1_ref [21, 1]
    w2_ref [21, 21] b2_ref [21, 1]
    w3_ref [3, 21]  b3_ref [3, 1]
    o_ref  [3, tile_n]   (lane-dense stores)
    """
    x = x_ref[...]
    # Contract the shared feature dim (dim 1 of both operands):
    # (21,6) . (tile_n,6)^T -> (21, tile_n).  The relayout of the narrow x
    # block is in-VMEM work hidden under the HBM DMA.
    h1 = lax.dot_general(w1_ref[...], x, (((1,), (1,)), ((), ())),
                         preferred_element_type=jnp.float32) + b1_ref[...]
    h1 = jnp.maximum(h1, 0.0)
    h2 = jnp.dot(w2_ref[...], h1, preferred_element_type=jnp.float32) + b2_ref[...]
    h2 = jnp.maximum(h2, 0.0)
    z3 = jnp.dot(w3_ref[...], h2, preferred_element_type=jnp.float32) + b3_ref[...]
    o_ref[...] = jnp.maximum(jnp.exp(z3) - 1.0, 0.0)


def mlp_forward(x, params, *, tile_n=16384, input_dtype=None,
                feature_major_output=False):
    """x: [N, 6] float32.  Returns [N, 3] float32 ([3, N] if feature_major_output)."""
    w1, b1, w2, b2, w3, b3 = params
    N, f_in = x.shape
    assert f_in == 6

    # ---- Tile sizing (batch sits on lanes -> multiples of 128) --------------
    tile_n = _round_up(max(int(tile_n), 128), 128)
    tile_n = min(tile_n, _round_up(N, 128))                   # don't exceed batch
    # Keep >=2 grid steps when possible so v7x's 2 TensorCores both get work.
    tile_n = min(tile_n, max(128, _round_up(pl.cdiv(N, 2), 128)))
    grid_n = pl.cdiv(N, tile_n)                                # ragged last block OK

    # ---- Operand prep (no transpose / pad of x) ------------------------------
    dt = jnp.float32 if input_dtype is None else input_dtype
    in_bytes = jnp.dtype(dt).itemsize
    x_in = x.astype(dt)
    w1t = w1.T.astype(dt)                    # [21, 6]
    w2t, w3t = w2.T, w3.T                    # [21, 21], [3, 21] (f32 path)
    b1c, b2c, b3c = b1.reshape(21, 1), b2.reshape(21, 1), b3.reshape(3, 1)

    # ---- VMEM budget: the [tile_n, 6] input block lane-pads to 128 in VMEM, so
    # it costs ~128*in_bytes per row per buffer; add out block + f32 temporaries.
    est_vmem = tile_n * (2 * 128 * in_bytes   # x block, double-buffered
                         + 2 * 32             # [3, tile_n] out, double-buffered
                         + 2 * 96 + 2 * 32    # h1/h2 and x^T/z3 temporaries
                         ) + (2 << 20)
    vmem_limit = int(min(64 << 20, max(32 << 20, 2 * est_vmem)))

    out_fm = pl.pallas_call(
        mlp_kernel,
        out_shape=jax.ShapeDtypeStruct((3, N), jnp.float32),
        grid_spec=pltpu.PrefetchScalarGridSpec(
            num_scalar_prefetch=0,
            grid=(grid_n,),
            in_specs=[
                pl.BlockSpec((tile_n, 6), lambda i: (i, 0)),   # x, natural layout
                pl.BlockSpec((21, 6),  lambda i: (0, 0)),      # W1^T (VMEM-resident)
                pl.BlockSpec((21, 1),  lambda i: (0, 0)),      # b1
                pl.BlockSpec((21, 21), lambda i: (0, 0)),      # W2^T
                pl.BlockSpec((21, 1),  lambda i: (0, 0)),      # b2
                pl.BlockSpec((3, 21),  lambda i: (0, 0)),      # W3^T
                pl.BlockSpec((3, 1),   lambda i: (0, 0)),      # b3
            ],
            out_specs=pl.BlockSpec((3, tile_n), lambda i: (0, i)),
        ),
        compiler_params=pltpu.CompilerParams(
            dimension_semantics=("parallel",),    # v7x: shard batch grid over 2 TCs
            vmem_limit_bytes=vmem_limit),
        cost_estimate=pl.CostEstimate(
            flops=2 * N * (6 * 21 + 21 * 21 + 21 * 3),
            transcendentals=3 * N,
            bytes_accessed=N * (6 * in_bytes + 3 * 4)),
    )(x_in, w1t, b1c, w2t, b2c, w3t, b3c)

    if feature_major_output:
        return out_fm          # [3, N]: skips the output transpose pass entirely
    return out_fm.T            # [N, 3]: PyTorch MLP layout


def init_params(key):
    k1, k2, k3 = jax.random.split(key, 3)
    # Effective "x @ W" matrices, uniform(-0.05, 0.05), matching the module's init
    # (PyTorch builds the (in,out) uniform matrix and stores its transpose as .weight).
    w1 = jax.random.uniform(k1, (6, 21), jnp.float32, -0.05, 0.05)
    w2 = jax.random.uniform(k2, (21, 21), jnp.float32, -0.05, 0.05)
    w3 = jax.random.uniform(k3, (21, 3), jnp.float32, -0.05, 0.05)
    b1 = jnp.zeros((21,), jnp.float32)
    b2 = jnp.zeros((21,), jnp.float32)
    b3 = jnp.zeros((3,), jnp.float32)
    return (w1, b1, w2, b2, w3, b3)


def mlp_reference(x, params):
    w1, b1, w2, b2, w3, b3 = params
    h1 = jnp.maximum(x @ w1 + b1, 0.0)
    h2 = jnp.maximum(h1 @ w2 + b2, 0.0)
    return jnp.maximum(jnp.exp(h2 @ w3 + b3) - 1.0, 0.0)


if __name__ == "__main__":
    key = jax.random.PRNGKey(0)
    k_params, k_x = jax.random.split(key)
    params = init_params(k_params)

    # Small batch, deliberately not a multiple of 128 (or even 8), to exercise
    # the ragged last block and the >=2-grid-step clamp.
    N = 300
    x = jax.random.uniform(k_x, (N, 6), jnp.float32, -1.0, 1.0)

    out = jax.block_until_ready(mlp_forward(x, params))
    ref = mlp_reference(x, params)

    assert out.shape == (N, 3)
    assert jnp.all(jnp.isfinite(out))
    assert jnp.allclose(out, ref, atol=1e-5, rtol=1e-4)

    print("KERNEL_OK")
</pallas_src>

<mosaic_0001>
module attributes {stable_mosaic.version = 11 : i64} {
  func.func @mlp_kernel(%arg0: i32, %arg1: memref<256x6xf32, #tpu.memory_space<vmem>>, %arg2: memref<21x6xf32, #tpu.memory_space<vmem>>, %arg3: memref<21x1xf32, #tpu.memory_space<vmem>>, %arg4: memref<21x21xf32, #tpu.memory_space<vmem>>, %arg5: memref<21x1xf32, #tpu.memory_space<vmem>>, %arg6: memref<3x21xf32, #tpu.memory_space<vmem>>, %arg7: memref<3x1xf32, #tpu.memory_space<vmem>>, %arg8: memref<3x256xf32, #tpu.memory_space<vmem>>) attributes {dimension_semantics = [#tpu.dimension_semantics<parallel>], iteration_bounds = array<i64: 2>, scalar_prefetch = 0 : i64, scratch_operands = 0 : i64, tpu.core_type = #tpu.core_type<tc>, window_params = [{transform_indices = @transform_0, window_bounds = array<i64: 256, 6>}, {pipeline_mode = #tpu.pipeline_mode<synchronous>, transform_indices = @transform_1, window_bounds = array<i64: 21, 6>}, {pipeline_mode = #tpu.pipeline_mode<synchronous>, transform_indices = @transform_2, window_bounds = array<i64: 21, 1>}, {pipeline_mode = #tpu.pipeline_mode<synchronous>, transform_indices = @transform_3, window_bounds = array<i64: 21, 21>}, {pipeline_mode = #tpu.pipeline_mode<synchronous>, transform_indices = @transform_4, window_bounds = array<i64: 21, 1>}, {pipeline_mode = #tpu.pipeline_mode<synchronous>, transform_indices = @transform_5, window_bounds = array<i64: 3, 21>}, {pipeline_mode = #tpu.pipeline_mode<synchronous>, transform_indices = @transform_6, window_bounds = array<i64: 3, 1>}, {transform_indices = @transform_7, window_bounds = array<i64: 3, 256>}]} {
    %c0 = arith.constant 0 : index
    %c0_0 = arith.constant 0 : index
    %0 = vector.load %arg1[%c0, %c0_0] : memref<256x6xf32, #tpu.memory_space<vmem>>, vector<256x6xf32>
    %c0_1 = arith.constant 0 : index
    %c0_2 = arith.constant 0 : index
    %1 = vector.load %arg2[%c0_1, %c0_2] : memref<21x6xf32, #tpu.memory_space<vmem>>, vector<21x6xf32>
    %cst = arith.constant dense<0.000000e+00> : vector<21x256xf32>
    %2 = tpu.matmul %1, %0, %cst {dimension_numbers = #tpu.dot_dimension_numbers<[1], [1], [0], [0], [0, 0, 1, 0], [], []>} : vector<21x6xf32>, vector<256x6xf32>, vector<21x256xf32> -> vector<21x256xf32>
    %c0_3 = arith.constant 0 : index
    %c0_4 = arith.constant 0 : index
    %3 = vector.load %arg3[%c0_3, %c0_4] : memref<21x1xf32, #tpu.memory_space<vmem>>, vector<21x1xf32>
    %4 = vector.broadcast %3 : vector<21x1xf32> to vector<21x256xf32>
    %5 = arith.addf %2, %4 : vector<21x256xf32>
    %cst_5 = arith.constant 0.000000e+00 : f32
    %6 = vector.broadcast %cst_5 : f32 to vector<21x256xf32>
    %7 = arith.maximumf %5, %6 : vector<21x256xf32>
    %c0_6 = arith.constant 0 : index
    %c0_7 = arith.constant 0 : index
    %8 = vector.load %arg4[%c0_6, %c0_7] : memref<21x21xf32, #tpu.memory_space<vmem>>, vector<21x21xf32>
    %cst_8 = arith.constant dense<0.000000e+00> : vector<21x256xf32>
    %9 = tpu.matmul %8, %7, %cst_8 {dimension_numbers = #tpu.dot_dimension_numbers<[1], [0], [0], [1], [0, 0, 1, 1], [], []>} : vector<21x21xf32>, vector<21x256xf32>, vector<21x256xf32> -> vector<21x256xf32>
    %c0_9 = arith.constant 0 : index
    %c0_10 = arith.constant 0 : index
    %10 = vector.load %arg5[%c0_9, %c0_10] : memref<21x1xf32, #tpu.memory_space<vmem>>, vector<21x1xf32>
    %11 = vector.broadcast %10 : vector<21x1xf32> to vector<21x256xf32>
    %12 = arith.addf %9, %11 : vector<21x256xf32>
    %cst_11 = arith.constant 0.000000e+00 : f32
    %13 = vector.broadcast %cst_11 : f32 to vector<21x256xf32>
    %14 = arith.maximumf %12, %13 : vector<21x256xf32>
    %c0_12 = arith.constant 0 : index
    %c0_13 = arith.constant 0 : index
    %15 = vector.load %arg6[%c0_12, %c0_13] : memref<3x21xf32, #tpu.memory_space<vmem>>, vector<3x21xf32>
    %cst_14 = arith.constant dense<0.000000e+00> : vector<3x256xf32>
    %16 = tpu.matmul %15, %14, %cst_14 {dimension_numbers = #tpu.dot_dimension_numbers<[1], [0], [0], [1], [0, 0, 1, 1], [], []>} : vector<3x21xf32>, vector<21x256xf32>, vector<3x256xf32> -> vector<3x256xf32>
    %c0_15 = arith.constant 0 : index
    %c0_16 = arith.constant 0 : index
    %17 = vector.load %arg7[%c0_15, %c0_16] : memref<3x1xf32, #tpu.memory_space<vmem>>, vector<3x1xf32>
    %18 = vector.broadcast %17 : vector<3x1xf32> to vector<3x256xf32>
    %19 = arith.addf %16, %18 : vector<3x256xf32>
    %20 = math.exp %19 : vector<3x256xf32>
    %cst_17 = arith.constant 1.000000e+00 : f32
    %21 = vector.broadcast %cst_17 : f32 to vector<3x256xf32>
    %22 = arith.subf %20, %21 : vector<3x256xf32>
    %cst_18 = arith.constant 0.000000e+00 : f32
    %23 = vector.broadcast %cst_18 : f32 to vector<3x256xf32>
    %24 = arith.maximumf %22, %23 : vector<3x256xf32>
    %c0_19 = arith.constant 0 : index
    %c0_20 = arith.constant 0 : index
    %25 = vector.load %arg8[%c0_19, %c0_20] : memref<3x256xf32, #tpu.memory_space<vmem>>, vector<3x256xf32>
    tpu.vector_store %arg8[%c0_19, %c0_20], %24 {strides = array<i32>} : memref<3x256xf32, #tpu.memory_space<vmem>>, vector<3x256xf32>,
    return
  }
  func.func @transform_0(%arg0: i32) -> (i32, i32) {
    %c0_i32 = arith.constant 0 : i32
    %c0_i32_0 = arith.constant 0 : i32
    return %arg0, %c0_i32 : i32, i32
  }
  func.func @transform_1(%arg0: i32) -> (i32, i32) {
    %c0_i32 = arith.constant 0 : i32
    %c0_i32_0 = arith.constant 0 : i32
    %c0_i32_1 = arith.constant 0 : i32
    return %c0_i32, %c0_i32_0 : i32, i32
  }
  func.func @transform_2(%arg0: i32) -> (i32, i32) {
    %c0_i32 = arith.constant 0 : i32
    %c0_i32_0 = arith.constant 0 : i32
    %c0_i32_1 = arith.constant 0 : i32
    return %c0_i32, %c0_i32_0 : i32, i32
  }
  func.func @transform_3(%arg0: i32) -> (i32, i32) {
    %c0_i32 = arith.constant 0 : i32
    %c0_i32_0 = arith.constant 0 : i32
    %c0_i32_1 = arith.constant 0 : i32
    return %c0_i32, %c0_i32_0 : i32, i32
  }
  func.func @transform_4(%arg0: i32) -> (i32, i32) {
    %c0_i32 = arith.constant 0 : i32
    %c0_i32_0 = arith.constant 0 : i32
    %c0_i32_1 = arith.constant 0 : i32
    return %c0_i32, %c0_i32_0 : i32, i32
  }
  func.func @transform_5(%arg0: i32) -> (i32, i32) {
    %c0_i32 = arith.constant 0 : i32
    %c0_i32_0 = arith.constant 0 : i32
    %c0_i32_1 = arith.constant 0 : i32
    return %c0_i32, %c0_i32_0 : i32, i32
  }
  func.func @transform_6(%arg0: i32) -> (i32, i32) {
    %c0_i32 = arith.constant 0 : i32
    %c0_i32_0 = arith.constant 0 : i32
    %c0_i32_1 = arith.constant 0 : i32
    return %c0_i32, %c0_i32_0 : i32, i32
  }
  func.func @transform_7(%arg0: i32) -> (i32, i32) {
    %c0_i32 = arith.constant 0 : i32
    %c0_i32_0 = arith.constant 0 : i32
    return %c0_i32, %arg0 : i32, i32
  }
}

</mosaic_0001>

<llo_original>
// kernel: tpu_custom_call.1
$region0: #{tpu_custom_call.1}
  #allocation0 [shape = 'u32[]', space=smem, size = 0x4, offset = 0x4, fixed_abs, tag = 'smem constant byte address 0x4 - core index']
  #allocation1 [shape = 'u32[144,128]{1,0:T(1,128)}', space=vmem, size = 0x12000, scoped, tag = 'internal scratch']
  %s0 = inlined_call_operand.vmem [shape: f32[300,6], index: 0, kind: input, shape index: {}]
  %s1 = inlined_call_operand.vmem [shape: f32[21,6], index: 1, kind: input, shape index: {}]
  %s2 = inlined_call_operand.vmem [shape: f32[21,1], index: 2, kind: input, shape index: {}]
  %s3 = inlined_call_operand.vmem [shape: f32[21,21], index: 3, kind: input, shape index: {}]
  %s4 = inlined_call_operand.vmem [shape: f32[21,1], index: 4, kind: input, shape index: {}]
  %s5 = inlined_call_operand.vmem [shape: f32[3,21], index: 5, kind: input, shape index: {}]
  %s6 = inlined_call_operand.vmem [shape: f32[3,1], index: 6, kind: input, shape index: {}]
  %s7 = inlined_call_operand.hbm [shape: f32[3,300], index: 7, kind: output, shape index: {}]
  %s8 = sld [smem:[#allocation0]]
  $region61: #{tpu_custom_call.1} parent=0
    _
  %s10 = ssub.s32 1, %s8
  %s11 = scalar_select 0, %s10, %s8
  $region1: #{tpu_custom_call.1} parent=0
    #allocation2 [shape = 'u8[8192]{0}', space=vmem, size = 0x2000, scoped, tag = 'output window, operand 0']
    #allocation3 [shape = 's32[2]{0}', space=sflag, size = 0x8, scoped, tag = 'scoped memory for tpu_custom_call.1']
    %12 = vsyncpa [#allocation3], 0
    %s13 = scalar_lea.sflag [#allocation3], 1
    %14 = vsyncpa %s13, 0
    loop: start=0, step=1, limit=4
    $region2: #{tpu_custom_call.1} parent=1 // loop_pre_header
      _
    $region3: #{tpu_custom_call.1} parent=1 // loop_header
      %s16 = sphi 0, %s20
      %p17 = scmp.ge.s32.totalorder %s16, 4
      %s26 = sphi 0, %s28
      %s29 = sphi 0, %s26
      %s30 = sphi 0, %s29
      %s46 = sphi 0, %s30
      %s50 = sphi 0, %s50
      %s52 = sphi 0, %s50
      %s53 = sphi 0, %s52
      %s67 = sphi 0, %s53
      %s71 = sphi 0, %s71
      %s73 = sphi 0, %s71
      %s74 = sphi 0, %s73
      %s88 = sphi 0, %s74
      %s92 = sphi 0, %s92
      %s94 = sphi 0, %s92
      %s95 = sphi 0, %s94
      %s109 = sphi 0, %s95
      %s113 = sphi 0, %s113
      %s115 = sphi 0, %s113
      %s116 = sphi 0, %s115
      %s130 = sphi 0, %s116
      %s134 = sphi 0, %s134
      %s136 = sphi 0, %s134
      %s137 = sphi 0, %s136
      %s151 = sphi 0, %s137
      %s155 = sphi 0, %s155
      %s157 = sphi 0, %s155
      %s158 = sphi 0, %s157
      %s172 = sphi 0, %s158
      %s178 = sphi 0, %s180
      %s181 = sphi 0, %s178
      %s182 = sphi 0, %s181
      %s198 = sphi 0, %s182
    $region4: #{tpu_custom_call.1} parent=1 // loop_header_branch
      %19 = sbr.rel (%p17) target = $region8
    $region5: #{tpu_custom_call.1} parent=1 // loop_body
      %s21 = ssub.s32 %s16, 1
      %s22 = ssub.s32 %s16, 2
      %s23 = sadd.s32 %s16, 1
      %s24 = ssub.s32 %s16, %s23
      %p25 = scmp.eq.s32.totalorder %s24, 0
      %s27 = sadd.s32 %s26, 1
      %s28 = scalar_select %p25, %s26, %s27
      %p31 = pneg %p25
      %p32 = scmp.eq.s32.totalorder %s16, 1
      %p33 = por %p31, %p32
      %p34 = scmp.ne.s32.totalorder %s26, %s29
      %p35 = scmp.eq.s32.totalorder %s16, 0
      %p36 = por %p34, %p35
      %p37 = scmp.ne.s32.totalorder %s26, %s29
      %p38 = scmp.eq.s32.totalorder %s21, 1
      %p39 = por %p37, %p38
      %p40 = scmp.ne.s32.totalorder %s29, %s30
      %p41 = scmp.eq.s32.totalorder %s21, 0
      %p42 = por %p40, %p41
      %p43 = scmp.ne.s32.totalorder %s29, %s30
      %p44 = scmp.eq.s32.totalorder %s22, 1
      %p45 = por %p43, %p44
      %p47 = scmp.ne.s32.totalorder %s30, %s46
      %p48 = scmp.eq.s32.totalorder %s22, 0
      %p49 = por %p47, %p48
      %s51 = sadd.s32 %s50, 1
      %p54 = scmp.eq.s32.totalorder %s16, 1
      %p55 = scmp.ne.s32.totalorder %s50, %s52
      %p56 = scmp.eq.s32.totalorder %s16, 0
      %p57 = por %p55, %p56
      %p58 = scmp.ne.s32.totalorder %s50, %s52
      %p59 = scmp.eq.s32.totalorder %s21, 1
      %p60 = por %p58, %p59
      %p61 = scmp.ne.s32.totalorder %s52, %s53
      %p62 = scmp.eq.s32.totalorder %s21, 0
      %p63 = por %p61, %p62
      %p64 = scmp.ne.s32.totalorder %s52, %s53
      %p65 = scmp.eq.s32.totalorder %s22, 1
      %p66 = por %p64, %p65
      %p68 = scmp.ne.s32.totalorder %s53, %s67
      %p69 = scmp.eq.s32.totalorder %s22, 0
      %p70 = por %p68, %p69
      %s72 = sadd.s32 %s71, 1
      %p75 = scmp.eq.s32.totalorder %s16, 1
      %p76 = scmp.ne.s32.totalorder %s71, %s73
      %p77 = scmp.eq.s32.totalorder %s16, 0
      %p78 = por %p76, %p77
      %p79 = scmp.ne.s32.totalorder %s71, %s73
      %p80 = scmp.eq.s32.totalorder %s21, 1
      %p81 = por %p79, %p80
      %p82 = scmp.ne.s32.totalorder %s73, %s74
      %p83 = scmp.eq.s32.totalorder %s21, 0
      %p84 = por %p82, %p83
      %p85 = scmp.ne.s32.totalorder %s73, %s74
      %p86 = scmp.eq.s32.totalorder %s22, 1
      %p87 = por %p85, %p86
      %p89 = scmp.ne.s32.totalorder %s74, %s88
      %p90 = scmp.eq.s32.totalorder %s22, 0
      %p91 = por %p89, %p90
      %s93 = sadd.s32 %s92, 1
      %p96 = scmp.eq.s32.totalorder %s16, 1
      %p97 = scmp.ne.s32.totalorder %s92, %s94
      %p98 = scmp.eq.s32.totalorder %s16, 0
      %p99 = por %p97, %p98
      %p100 = scmp.ne.s32.totalorder %s92, %s94
      %p101 = scmp.eq.s32.totalorder %s21, 1
      %p102 = por %p100, %p101
      %p103 = scmp.ne.s32.totalorder %s94, %s95
      %p104 = scmp.eq.s32.totalorder %s21, 0
      %p105 = por %p103, %p104
      %p106 = scmp.ne.s32.totalorder %s94, %s95
      %p107 = scmp.eq.s32.totalorder %s22, 1
      %p108 = por %p106, %p107
      %p110 = scmp.ne.s32.totalorder %s95, %s109
      %p111 = scmp.eq.s32.totalorder %s22, 0
      %p112 = por %p110, %p111
      %s114 = sadd.s32 %s113, 1
      %p117 = scmp.eq.s32.totalorder %s16, 1
      %p118 = scmp.ne.s32.totalorder %s113, %s115
      %p119 = scmp.eq.s32.totalorder %s16, 0
      %p120 = por %p118, %p119
      %p121 = scmp.ne.s32.totalorder %s113, %s115
      %p122 = scmp.eq.s32.totalorder %s21, 1
      %p123 = por %p121, %p122
      %p124 = scmp.ne.s32.totalorder %s115, %s116
      %p125 = scmp.eq.s32.totalorder %s21, 0
      %p126 = por %p124, %p125
      %p127 = scmp.ne.s32.totalorder %s115, %s116
      %p128 = scmp.eq.s32.totalorder %s22, 1
      %p129 = por %p127, %p128
      %p131 = scmp.ne.s32.totalorder %s116, %s130
      %p132 = scmp.eq.s32.totalorder %s22, 0
      %p133 = por %p131, %p132
      %s135 = sadd.s32 %s134, 1
      %p138 = scmp.eq.s32.totalorder %s16, 1
      %p139 = scmp.ne.s32.totalorder %s134, %s136
      %p140 = scmp.eq.s32.totalorder %s16, 0
      %p141 = por %p139, %p140
      %p142 = scmp.ne.s32.totalorder %s134, %s136
      %p143 = scmp.eq.s32.totalorder %s21, 1
      %p144 = por %p142, %p143
      %p145 = scmp.ne.s32.totalorder %s136, %s137
      %p146 = scmp.eq.s32.totalorder %s21, 0
      %p147 = por %p145, %p146
      %p148 = scmp.ne.s32.totalorder %s136, %s137
      %p149 = scmp.eq.s32.totalorder %s22, 1
      %p150 = por %p148, %p149
      %p152 = scmp.ne.s32.totalorder %s137, %s151
      %p153 = scmp.eq.s32.totalorder %s22, 0
      %p154 = por %p152, %p153
      %s156 = sadd.s32 %s155, 1
      %p159 = scmp.eq.s32.totalorder %s16, 1
      %p160 = scmp.ne.s32.totalorder %s155, %s157
      %p161 = scmp.eq.s32.totalorder %s16, 0
      %p162 = por %p160, %p161
      %p163 = scmp.ne.s32.totalorder %s155, %s157
      %p164 = scmp.eq.s32.totalorder %s21, 1
      %p165 = por %p163, %p164
      %p166 = scmp.ne.s32.totalorder %s157, %s158
      %p167 = scmp.eq.s32.totalorder %s21, 0
      %p168 = por %p166, %p167
      %p169 = scmp.ne.s32.totalorder %s157, %s158
      %p170 = scmp.eq.s32.totalorder %s22, 1
      %p171 = por %p169, %p170
      %p173 = scmp.ne.s32.totalorder %s158, %s172
      %p174 = scmp.eq.s32.totalorder %s22, 0
      %p175 = por %p173, %p174
      %s176 = ssub.s32 %s16, %s23
      %p177 = scmp.eq.s32.totalorder %s176, 0
      %s179 = sadd.s32 %s178, 1
      %s180 = scalar_select %p177, %s178, %s179
      %p183 = pneg %p177
      %p184 = scmp.eq.s32.totalorder %s16, 1
      %p185 = por %p183, %p184
      %p186 = scmp.ne.s32.totalorder %s178, %s181
      %p187 = scmp.eq.s32.totalorder %s16, 0
      %p188 = por %p186, %p187
      %p189 = scmp.ne.s32.totalorder %s178, %s181
      %p190 = scmp.eq.s32.totalorder %s21, 1
      %p191 = por %p189, %p190
      %p192 = scmp.ne.s32.totalorder %s181, %s182
      %p193 = scmp.eq.s32.totalorder %s21, 0
      %p194 = por %p192, %p193
      %p195 = scmp.ne.s32.totalorder %s181, %s182
      %p196 = scmp.eq.s32.totalorder %s22, 1
      %p197 = por %p195, %p196
      %p199 = scmp.ne.s32.totalorder %s182, %s198
      %p200 = scmp.eq.s32.totalorder %s22, 0
      %p201 = por %p199, %p200
      %p202 = scmp.le.s32.totalorder 1, %s16
      %p203 = scmp.lt.s32.totalorder %s16, 3
      %p204 = pnand %p202, %p203
      %p205 = pneg %p204
      // Predicated region
      $region9: #{tpu_custom_call.1} parent=5 // pred_check
        _
      $region10: #{tpu_custom_call.1} parent=5 // pred_check_branch
        %207 = sbr.rel (%p204) target = $region12
      $region11: #{tpu_custom_call.1} parent=5 // pred_region
        %s208 = ssub.s32 %s16, 1
        // Predicated region
        $region13: #{tpu_custom_call.1} parent=11 // pred_check
          %p209 = pneg %p63
        $region14: #{tpu_custom_call.1} parent=11 // pred_check_branch
          %211 = sbr.rel (%p209) target = $region16
        $region15: #{tpu_custom_call.1} parent=11 // pred_region
          _
        $region16: #{tpu_custom_call.1} parent=11 // pred_fallthru
          _
        // Predicated region
        $region17: #{tpu_custom_call.1} parent=11 // pred_check
          %p212 = pneg %p84
        $region18: #{tpu_custom_call.1} parent=11 // pred_check_branch
          %214 = sbr.rel (%p212) target = $region20
        $region19: #{tpu_custom_call.1} parent=11 // pred_region
          _
        $region20: #{tpu_custom_call.1} parent=11 // pred_fallthru
          _
        // Predicated region
        $region21: #{tpu_custom_call.1} parent=11 // pred_check
          %p215 = pneg %p105
        $region22: #{tpu_custom_call.1} parent=11 // pred_check_branch
          %217 = sbr.rel (%p215) target = $region24
        $region23: #{tpu_custom_call.1} parent=11 // pred_region
          _
        $region24: #{tpu_custom_call.1} parent=11 // pred_fallthru
          _
        // Predicated region
        $region25: #{tpu_custom_call.1} parent=11 // pred_check
          %p218 = pneg %p126
        $region26: #{tpu_custom_call.1} parent=11 // pred_check_branch
          %220 = sbr.rel (%p218) target = $region28
        $region27: #{tpu_custom_call.1} parent=11 // pred_region
          _
        $region28: #{tpu_custom_call.1} parent=11 // pred_fallthru
          _
        // Predicated region
        $region29: #{tpu_custom_call.1} parent=11 // pred_check
          %p221 = pneg %p147
        $region30: #{tpu_custom_call.1} parent=11 // pred_check_branch
          %223 = sbr.rel (%p221) target = $region32
        $region31: #{tpu_custom_call.1} parent=11 // pred_region
          _
        $region32: #{tpu_custom_call.1} parent=11 // pred_fallthru
          _
        // Predicated region
        $region33: #{tpu_custom_call.1} parent=11 // pred_check
          %p224 = pneg %p168
        $region34: #{tpu_custom_call.1} parent=11 // pred_check_branch
          %226 = sbr.rel (%p224) target = $region36
        $region35: #{tpu_custom_call.1} parent=11 // pred_region
          _
        $region36: #{tpu_custom_call.1} parent=11 // pred_fallthru
          _
      $region12: #{tpu_custom_call.1} parent=5 // pred_fallthru
        _
      %p227 = scmp.lt.s32.totalorder %s16, 2
      // Predicated region
      $region37: #{tpu_custom_call.1} parent=5 // pred_check
        %p228 = pneg %p227
      $region38: #{tpu_custom_call.1} parent=5 // pred_check_branch
        %230 = sbr.rel (%p228) target = $region40
      $region39: #{tpu_custom_call.1} parent=5 // pred_region
        // Predicated region
        $region41: #{tpu_custom_call.1} parent=39 // pred_check
          %p231 = pneg %p36
        $region42: #{tpu_custom_call.1} parent=39 // pred_check_branch
          %233 = sbr.rel (%p231) target = $region44
        $region43: #{tpu_custom_call.1} parent=39 // pred_region
          %s234 = smul.u32 32, %s16
          %s235 = ssub.s32 38, %s234
          %p236 = scmp.lt.s32.totalorder %s235, 32
          %s237 = scalar_select %p236, %s235, 32
          %s238 = smul.u32 128, %s237
          %p239 = scmp.lt.s32.totalorder %s234, 37
          %s240 = scalar_select %p239, %s234, 37
          %s241 = smul.addr %s240, 8
          %s242 = scalar_lea.vmem %s0, %s241
          %s243 = smul.u32 32, %s16
          %s244 = ssub.s32 38, %s243
          %p245 = scmp.lt.s32.totalorder %s244, 32
          %s246 = scalar_select %p245, %s244, 32
          %s247 = smul.u32 128, %s246
        $region44: #{tpu_custom_call.1} parent=39 // pred_fallthru
          _
      $region40: #{tpu_custom_call.1} parent=5 // pred_fallthru
        _
      %p248 = scmp.le.s32.totalorder 1, %s16
      %p249 = scmp.lt.s32.totalorder %s16, 3
      %p250 = pnand %p248, %p249
      %p251 = pneg %p250
      // Predicated region
      $region45: #{tpu_custom_call.1} parent=5 // pred_check
        _
      $region46: #{tpu_custom_call.1} parent=5 // pred_check_branch
        %253 = sbr.rel (%p250) target = $region48
      $region47: #{tpu_custom_call.1} parent=5 // pred_region
        %s254 = ssub.s32 %s16, 1
        %s255 = smul.u32 32, %s21
        %s256 = ssub.s32 38, %s255
        %p257 = scmp.lt.s32.totalorder %s256, 32
        %s258 = scalar_select %p257, %s256, 32
        %s259 = smul.u32 128, %s258
        %p260 = scmp.lt.s32.totalorder %s255, 37
        %s261 = scalar_select %p260, %s255, 37
        %s262 = smul.addr %s261, 8
        %s263 = scalar_lea.vmem %s0, %s262
        %p264 = pneg %p42
        %p265 = pneg %p39
        %p266 = pneg %p63
        %p267 = pneg %p60
        %p268 = pneg %p84
        %p269 = pneg %p81
        %p270 = pneg %p105
        %p271 = pneg %p102
        %p272 = pneg %p126
        %p273 = pneg %p123
        %p274 = pneg %p147
        %p275 = pneg %p144
        %p276 = pneg %p168
        %p277 = pneg %p165
        %p278 = pneg %p194
        %p279 = pneg %p191
        %s280 = sand.u32 %s181, 1
        %s281 = scalar_lea.sflag [#allocation3], %s280
        %s282 = sand.u32 %s181, 1
        %s283 = smul.addr %s282, 8
        %s284 = scalar_lea.vmem [#allocation2], %s283
        %s285 = smul.u32 32, %s21
        %s286 = ssub.s32 38, %s285
        %p287 = scmp.lt.s32.totalorder %s286, 32
        %s288 = scalar_select %p287, %s286, 32
        %s289 = smul.u32 128, %s288
        %p290 = scmp.lt.s32.totalorder %s285, 37
        %s291 = scalar_select %p290, %s285, 37
        %s292 = smul.addr %s291, 8
        %s293 = scalar_lea.vmem %s0, %s292
        %s294 = smul.u32 32, %s21
        %s295 = ssub.s32 38, %s294
        %p296 = scmp.lt.s32.totalorder %s295, 32
        %s297 = scalar_select %p296, %s295, 32
        %s298 = smul.u32 128, %s297
        %s299 = smul.u32 2, %s21
        %s300 = ssub.s32 3, %s299
        %p301 = scmp.lt.s32.totalorder %s300, 2
        %s302 = scalar_select %p301, %s300, 2
        %s303 = smul.u32 64, %s302
        %v304 = vld [vmem:[%s293] sm:$0xff]
        %v305 = vld [vmem:[%s293 + $0x8] sm:$0xff]
        %v306 = vld [vmem:[%s293 + $0x10] sm:$0xff]
        %v307 = vld [vmem:[%s293 + $0x18] sm:$0xff]
        %v308 = vld [vmem:[%s293 + $0x20] sm:$0xff]
        %v309 = vld [vmem:[%s293 + $0x28] sm:$0xff]
        %v310 = vld [vmem:[%s293 + $0x30] sm:$0xff]
        %v311 = vld [vmem:[%s293 + $0x38] sm:$0xff]
        %v312 = vld [vmem:[%s293 + $0x40] sm:$0xff]
        %v313 = vld [vmem:[%s293 + $0x48] sm:$0xff]
        %v314 = vld [vmem:[%s293 + $0x50] sm:$0xff]
        %v315 = vld [vmem:[%s293 + $0x58] sm:$0xff]
        %v316 = vld [vmem:[%s293 + $0x60] sm:$0xff]
        %v317 = vld [vmem:[%s293 + $0x68] sm:$0xff]
        %v318 = vld [vmem:[%s293 + $0x70] sm:$0xff]
        %v319 = vld [vmem:[%s293 + $0x78] sm:$0xff]
        %v320 = vld [vmem:[%s293 + $0x80] sm:$0xff]
        %v321 = vld [vmem:[%s293 + $0x88] sm:$0xff]
        %v322 = vld [vmem:[%s293 + $0x90] sm:$0xff]
        %v323 = vld [vmem:[%s293 + $0x98] sm:$0xff]
        %v324 = vld [vmem:[%s293 + $0xa0] sm:$0xff]
        %v325 = vld [vmem:[%s293 + $0xa8] sm:$0xff]
        %v326 = vld [vmem:[%s293 + $0xb0] sm:$0xff]
        %v327 = vld [vmem:[%s293 + $0xb8] sm:$0xff]
        %v328 = vld [vmem:[%s293 + $0xc0] sm:$0xff]
        %v329 = vld [vmem:[%s293 + $0xc8] sm:$0xff]
        %v330 = vld [vmem:[%s293 + $0xd0] sm:$0xff]
        %v331 = vld [vmem:[%s293 + $0xd8] sm:$0xff]
        %v332 = vld [vmem:[%s293 + $0xe0] sm:$0xff]
        %v333 = vld [vmem:[%s293 + $0xe8] sm:$0xff]
        %v334 = vld [vmem:[%s293 + $0xf0] sm:$0xff]
        %v335 = vld [vmem:[%s293 + $0xf8] sm:$0xff]
        %v336 = vld [vmem:[%s1] sm:$0xff]
        %v337 = vld [vmem:[%s1 + $0x8] sm:$0xff]
        %v338 = vld [vmem:[%s1 + $0x10] sm:$0x1f]
        %v339 = vld [vmem:[%s2] sm:$0xff]
        %v340 = vld [vmem:[%s2 + $0x8] sm:$0xff]
        %v341 = vld [vmem:[%s2 + $0x10] sm:$0x1f]
        %343 = vset.pattern.permute.xlu0 0
        %344 = vperm.xlu0 %343, %v339
        %v345 = vpop.permute.xlu0 %344
        %348 = vset.pattern.permute.xlu0 0
        %349 = vperm.xlu0 %348, %v340
        %v350 = vpop.permute.xlu0 %349
        %353 = vset.pattern.permute.xlu0 0
        %354 = vperm.xlu0 %353, %v341
        %v355 = vpop.permute.xlu0 %354
        %vm357 = vcmask 48128
        %v359 = vsel %vm357, %v336, 0
        %v362 = vsel %vm357, %v337, 0
        %v365 = vsel %vm357, %v338, 0
        %v368 = vsel %vm357, %v304, 0
        %v371 = vsel %vm357, %v305, 0
        %v374 = vsel %vm357, %v306, 0
        %v377 = vsel %vm357, %v307, 0
        %v380 = vsel %vm357, %v308, 0
        %v383 = vsel %vm357, %v309, 0
        %v386 = vsel %vm357, %v310, 0
        %v389 = vsel %vm357, %v311, 0
        %v392 = vsel %vm357, %v312, 0
        %v395 = vsel %vm357, %v313, 0
        %v398 = vsel %vm357, %v314, 0
        %v401 = vsel %vm357, %v315, 0
        %v404 = vsel %vm357, %v316, 0
        %v407 = vsel %vm357, %v317, 0
        %v410 = vsel %vm357, %v318, 0
        %v413 = vsel %vm357, %v319, 0
        %v416 = vsel %vm357, %v320, 0
        %v419 = vsel %vm357, %v321, 0
        %v422 = vsel %vm357, %v322, 0
        %v425 = vsel %vm357, %v323, 0
        %v428 = vsel %vm357, %v324, 0
        %v431 = vsel %vm357, %v325, 0
        %v434 = vsel %vm357, %v326, 0
        %v437 = vsel %vm357, %v327, 0
        %v440 = vsel %vm357, %v328, 0
        %v443 = vsel %vm357, %v329, 0
        %v446 = vsel %vm357, %v330, 0
        %v449 = vsel %vm357, %v331, 0
        %v452 = vsel %vm357, %v332, 0
        %v455 = vsel %vm357, %v333, 0
        %v458 = vsel %vm357, %v334, 0
        %v461 = vsel %vm357, %v335, 0
        %463 = vmatprep.subr.mxu0 0.0
        %464 = vmatpush1.xpose.msra.mxu0 %v413
        %465 = vmatprep.subr.mxu0 0.0
        %466 = vmatpush1.xpose.msra.mxu0 %v410
        %467 = vmatprep.subr.mxu0 0.0
        %468 = vmatpush1.xpose.msra.mxu0 %v407
        %469 = vmatprep.subr.mxu0 0.0
        %470 = vmatpush1.xpose.msra.mxu0 %v404
        %471 = vmatprep.subr.mxu0 0.0
        %472 = vmatpush1.xpose.msra.mxu0 %v401
        %473 = vmatprep.subr.mxu0 0.0
        %474 = vmatpush1.xpose.msra.mxu0 %v398
        %475 = vmatprep.subr.mxu0 0.0
        %476 = vmatpush1.xpose.msra.mxu0 %v395
        %477 = vmatprep.subr.mxu0 0.0
        %478 = vmatpush1.xpose.msra.mxu0 %v392
        %479 = vmatprep.subr.mxu0 0.0
        %480 = vmatpush1.xpose.msra.mxu0 %v389
        %481 = vmatprep.subr.mxu0 0.0
        %482 = vmatpush1.xpose.msra.mxu0 %v386
        %483 = vmatprep.subr.mxu0 0.0
        %484 = vmatpush1.xpose.msra.mxu0 %v383
        %485 = vmatprep.subr.mxu0 0.0
        %486 = vmatpush1.xpose.msra.mxu0 %v380
        %487 = vmatprep.subr.mxu0 0.0
        %488 = vmatpush1.xpose.msra.mxu0 %v377
        %489 = vmatprep.subr.mxu0 0.0
        %490 = vmatpush1.xpose.msra.mxu0 %v374
        %491 = vmatprep.subr.mxu0 0.0
        %492 = vmatpush1.xpose.msra.mxu0 %v371
        %493 = vmatprep.subr.mxu0 0.0
        %494 = vmatpush1.xpose.msra.mxu0 %v368
        %495 = vmatprep.subr.mxu0 0.0
        %496 = vmatpush2.xpose.msra.mxu0 %v461
        %497 = vmatprep.subr.mxu0 0.0
        %498 = vmatpush2.xpose.msra.mxu0 %v458
        %499 = vmatprep.subr.mxu0 0.0
        %500 = vmatpush2.xpose.msra.mxu0 %v455
        %501 = vmatprep.subr.mxu0 0.0
        %502 = vmatpush2.xpose.msra.mxu0 %v452
        %503 = vmatprep.subr.mxu0 0.0
        %504 = vmatpush2.xpose.msra.mxu0 %v449
        %505 = vmatprep.subr.mxu0 0.0
        %506 = vmatpush2.xpose.msra.mxu0 %v446
        %507 = vmatprep.subr.mxu0 0.0
        %508 = vmatpush2.xpose.msra.mxu0 %v443
        %509 = vmatprep.subr.mxu0 0.0
        %510 = vmatpush2.xpose.msra.mxu0 %v440
        %511 = vmatprep.subr.mxu0 0.0
        %512 = vmatpush2.xpose.msra.mxu0 %v437
        %513 = vmatprep.subr.mxu0 0.0
        %514 = vmatpush2.xpose.msra.mxu0 %v434
        %515 = vmatprep.subr.mxu0 0.0
        %516 = vmatpush2.xpose.msra.mxu0 %v431
        %517 = vmatprep.subr.mxu0 0.0
        %518 = vmatpush2.xpose.msra.mxu0 %v428
        %519 = vmatprep.subr.mxu0 0.0
        %520 = vmatpush2.xpose.msra.mxu0 %v425
        %521 = vmatprep.subr.mxu0 0.0
        %522 = vmatpush2.xpose.msra.mxu0 %v422
        %523 = vmatprep.subr.mxu0 0.0
        %524 = vmatpush2.xpose.msra.mxu0 %v419
        %525 = vmatprep.subr.mxu0 0.0
        %526 = vmatpush2.xpose.msra.mxu0 %v416
        %527 = vmatprep.mubr.f32.mxu0 0.0
        %528 = vmatmul.mubr.f32.gmra.mxu0 %v359
        %v529 = vpop.f32.mrf.mxu0
        %v530 = vadd.f32 %v345, %v529
        %v531 = vpop.f32.mrf.mxu0
        %v532 = vadd.f32 %v345, %v531
        %533 = vmatprep.mubr.f32.mxu0 0.0
        %534 = vmatmul.mubr.f32.gmra.mxu0 %v362
        %v535 = vpop.f32.mrf.mxu0
        %v536 = vadd.f32 %v350, %v535
        %v537 = vpop.f32.mrf.mxu0
        %v538 = vadd.f32 %v350, %v537
        %539 = vmatprep.mubr.f32.mxu0 0.0
        %540 = vmatmul.mubr.f32.gmra.mxu0 %v365
        %v541 = vpop.f32.mrf.mxu0
        %v542 = vadd.f32 %v355, %v541
        %v543 = vpop.f32.mrf.mxu0
        %v544 = vadd.f32 %v355, %v543
        %545 = vdwg.mxu0
        %v546 = vmax.f32 %v530, 0.0
        %v547 = vmax.f32 %v532, 0.0
        %v548 = vmax.f32 %v536, 0.0
        %v549 = vmax.f32 %v538, 0.0
        %v550 = vmax.f32 %v542, 0.0
        %v551 = vmax.f32 %v544, 0.0
        %v552 = vld [vmem:[%s3] sm:$0xff]
        %v553 = vld [vmem:[%s3 + $0x8] sm:$0xff]
        %v554 = vld [vmem:[%s3 + $0x10] sm:$0x1f]
        %v555 = vld [vmem:[%s4] sm:$0xff]
        %v556 = vld [vmem:[%s4 + $0x8] sm:$0xff]
        %v557 = vld [vmem:[%s4 + $0x10] sm:$0x1f]
        %559 = vset.pattern.permute.xlu0 0
        %560 = vperm.xlu0 %559, %v555
        %v561 = vpop.permute.xlu0 %560
        %564 = vset.pattern.permute.xlu0 0
        %565 = vperm.xlu0 %564, %v556
        %v566 = vpop.permute.xlu0 %565
        %569 = vset.pattern.permute.xlu0 0
        %570 = vperm.xlu0 %569, %v557
        %v571 = vpop.permute.xlu0 %570
        %vm573 = vcmask 171008
        %v575 = vsel %vm573, %v552, 0
        %v578 = vsel %vm573, %v553, 0
        %v581 = vsel %vm573, %v554, 0
        %vm583 = vcmask 1044480
        %v585 = vsel %vm583, %v550, 0
        %v588 = vsel %vm583, %v551, 0
        %590 = vmatprep.subr.mxu0 0.0
        %591 = vmatpush1.msra.mxu0 0.0
        %592 = vmatprep.subr.mxu0 0.0
        %593 = vmatpush1.msra.mxu0 0.0
        %594 = vmatprep.subr.mxu0 0.0
        %595 = vmatpush1.msra.mxu0 0.0
        %596 = vmatprep.subr.mxu0 0.0
        %597 = vmatpush1.msra.mxu0 0.0
        %598 = vmatprep.subr.mxu0 0.0
        %599 = vmatpush1.msra.mxu0 0.0
        %600 = vmatprep.subr.mxu0 0.0
        %601 = vmatpush1.msra.mxu0 0.0
        %602 = vmatprep.subr.mxu0 0.0
        %603 = vmatpush1.msra.mxu0 0.0
        %604 = vmatprep.subr.mxu0 0.0
        %605 = vmatpush1.msra.mxu0 0.0
        %606 = vmatprep.subr.mxu0 0.0
        %607 = vmatpush1.msra.mxu0 0.0
        %608 = vmatprep.subr.mxu0 0.0
        %609 = vmatpush1.msra.mxu0 0.0
        %610 = vmatprep.subr.mxu0 0.0
        %611 = vmatpush1.msra.mxu0 0.0
        %612 = vmatprep.subr.mxu0 0.0
        %613 = vmatpush1.msra.mxu0 0.0
        %614 = vmatprep.subr.mxu0 0.0
        %615 = vmatpush1.msra.mxu0 0.0
        %616 = vmatprep.subr.mxu0 %v588
        %617 = vmatpush1.msra.mxu0 %v585
        %618 = vmatprep.subr.mxu0 %v549
        %619 = vmatpush1.msra.mxu0 %v548
        %620 = vmatprep.subr.mxu0 %v547
        %621 = vmatpush1.msra.mxu0 %v546
        %622 = vmatprep.subr.mxu0 0.0
        %623 = vmatpush2.msra.mxu0 0.0
        %624 = vmatprep.subr.mxu0 0.0
        %625 = vmatpush2.msra.mxu0 0.0
        %626 = vmatprep.subr.mxu0 0.0
        %627 = vmatpush2.msra.mxu0 0.0
        %628 = vmatprep.subr.mxu0 0.0
        %629 = vmatpush2.msra.mxu0 0.0
        %630 = vmatprep.subr.mxu0 0.0
        %631 = vmatpush2.msra.mxu0 0.0
        %632 = vmatprep.subr.mxu0 0.0
        %633 = vmatpush2.msra.mxu0 0.0
        %634 = vmatprep.subr.mxu0 0.0
        %635 = vmatpush2.msra.mxu0 0.0
        %636 = vmatprep.subr.mxu0 0.0
        %637 = vmatpush2.msra.mxu0 0.0
        %638 = vmatprep.subr.mxu0 0.0
        %639 = vmatpush2.msra.mxu0 0.0
        %640 = vmatprep.subr.mxu0 0.0
        %641 = vmatpush2.msra.mxu0 0.0
        %642 = vmatprep.subr.mxu0 0.0
        %643 = vmatpush2.msra.mxu0 0.0
        %644 = vmatprep.subr.mxu0 0.0
        %645 = vmatpush2.msra.mxu0 0.0
        %646 = vmatprep.subr.mxu0 0.0
        %647 = vmatpush2.msra.mxu0 0.0
        %648 = vmatprep.subr.mxu0 0.0
        %649 = vmatpush2.msra.mxu0 0.0
        %650 = vmatprep.subr.mxu0 0.0
        %651 = vmatpush2.msra.mxu0 0.0
        %652 = vmatprep.subr.mxu0 0.0
        %653 = vmatpush2.msra.mxu0 0.0
        %654 = vmatprep.mubr.f32.mxu0 0.0
        %655 = vmatmul.mubr.f32.gmra.mxu0 %v575
        %v656 = vpop.f32.mrf.mxu0
        %v657 = vadd.f32 %v561, %v656
        %v658 = vpop.f32.mrf.mxu0
        %v659 = vadd.f32 %v561, %v658
        %660 = vmatprep.mubr.f32.mxu0 0.0
        %661 = vmatmul.mubr.f32.gmra.mxu0 %v578
        %v662 = vpop.f32.mrf.mxu0
        %v663 = vadd.f32 %v566, %v662
        %v664 = vpop.f32.mrf.mxu0
        %v665 = vadd.f32 %v566, %v664
        %666 = vmatprep.mubr.f32.mxu0 0.0
        %667 = vmatmul.mubr.f32.gmra.mxu0 %v581
        %v668 = vpop.f32.mrf.mxu0
        %v669 = vadd.f32 %v571, %v668
        %v670 = vpop.f32.mrf.mxu0
        %v671 = vadd.f32 %v571, %v670
        %672 = vdwg.mxu0
        %v673 = vmax.f32 %v657, 0.0
        %v674 = vmax.f32 %v659, 0.0
        %v675 = vmax.f32 %v663, 0.0
        %v676 = vmax.f32 %v665, 0.0
        %v677 = vmax.f32 %v669, 0.0
        %v678 = vmax.f32 %v671, 0.0
        %v679 = vld [vmem:[%s5] sm:$0x7]
        %v680 = vld [vmem:[%s6] sm:$0x7]
        %682 = vset.pattern.permute.xlu0 0
        %683 = vperm.xlu0 %682, %v680
        %v684 = vpop.permute.xlu0 %683
        %v687 = vsel %vm573, %v679, 0
        %v690 = vsel %vm583, %v677, 0
        %v693 = vsel %vm583, %v678, 0
        %695 = vmatprep.subr.mxu0 0.0
        %696 = vmatpush1.msra.mxu0 0.0
        %697 = vmatprep.subr.mxu0 0.0
        %698 = vmatpush1.msra.mxu0 0.0
        %699 = vmatprep.subr.mxu0 0.0
        %700 = vmatpush1.msra.mxu0 0.0
        %701 = vmatprep.subr.mxu0 0.0
        %702 = vmatpush1.msra.mxu0 0.0
        %703 = vmatprep.subr.mxu0 0.0
        %704 = vmatpush1.msra.mxu0 0.0
        %705 = vmatprep.subr.mxu0 0.0
        %706 = vmatpush1.msra.mxu0 0.0
        %707 = vmatprep.subr.mxu0 0.0
        %708 = vmatpush1.msra.mxu0 0.0
        %709 = vmatprep.subr.mxu0 0.0
        %710 = vmatpush1.msra.mxu0 0.0
        %711 = vmatprep.subr.mxu0 0.0
        %712 = vmatpush1.msra.mxu0 0.0
        %713 = vmatprep.subr.mxu0 0.0
        %714 = vmatpush1.msra.mxu0 0.0
        %715 = vmatprep.subr.mxu0 0.0
        %716 = vmatpush1.msra.mxu0 0.0
        %717 = vmatprep.subr.mxu0 0.0
        %718 = vmatpush1.msra.mxu0 0.0
        %719 = vmatprep.subr.mxu0 0.0
        %720 = vmatpush1.msra.mxu0 0.0
        %721 = vmatprep.subr.mxu0 %v693
        %722 = vmatpush1.msra.mxu0 %v690
        %723 = vmatprep.subr.mxu0 %v676
        %724 = vmatpush1.msra.mxu0 %v675
        %725 = vmatprep.subr.mxu0 %v674
        %726 = vmatpush1.msra.mxu0 %v673
        %727 = vmatprep.subr.mxu0 0.0
        %728 = vmatpush2.msra.mxu0 0.0
        %729 = vmatprep.subr.mxu0 0.0
        %730 = vmatpush2.msra.mxu0 0.0
        %731 = vmatprep.subr.mxu0 0.0
        %732 = vmatpush2.msra.mxu0 0.0
        %733 = vmatprep.subr.mxu0 0.0
        %734 = vmatpush2.msra.mxu0 0.0
        %735 = vmatprep.subr.mxu0 0.0
        %736 = vmatpush2.msra.mxu0 0.0
        %737 = vmatprep.subr.mxu0 0.0
        %738 = vmatpush2.msra.mxu0 0.0
        %739 = vmatprep.subr.mxu0 0.0
        %740 = vmatpush2.msra.mxu0 0.0
        %741 = vmatprep.subr.mxu0 0.0
        %742 = vmatpush2.msra.mxu0 0.0
        %743 = vmatprep.subr.mxu0 0.0
        %744 = vmatpush2.msra.mxu0 0.0
        %745 = vmatprep.subr.mxu0 0.0
        %746 = vmatpush2.msra.mxu0 0.0
        %747 = vmatprep.subr.mxu0 0.0
        %748 = vmatpush2.msra.mxu0 0.0
        %749 = vmatprep.subr.mxu0 0.0
        %750 = vmatpush2.msra.mxu0 0.0
        %751 = vmatprep.subr.mxu0 0.0
        %752 = vmatpush2.msra.mxu0 0.0
        %753 = vmatprep.subr.mxu0 0.0
        %754 = vmatpush2.msra.mxu0 0.0
        %755 = vmatprep.subr.mxu0 0.0
        %756 = vmatpush2.msra.mxu0 0.0
        %757 = vmatprep.subr.mxu0 0.0
        %758 = vmatpush2.msra.mxu0 0.0
        %759 = vmatprep.mubr.f32.mxu0 0.0
        %760 = vmatmul.mubr.f32.gmra.mxu0 %v687
        %v761 = vpop.f32.mrf.mxu0
        %v762 = vadd.f32 %v684, %v761
        %v763 = vpop.f32.mrf.mxu0
        %v764 = vadd.f32 %v684, %v763
        %765 = vdwg.mxu0
        %v766 = vmul.f32 %v762, 1.442695
        %v767 = vpow.pop %v766
        %v768 = vmul.f32 %v764, 1.442695
        %v769 = vpow.pop %v768
        %v770 = vsub.f32 %v767, 1.0
        %v771 = vsub.f32 %v769, 1.0
        %v772 = vmax.f32 %v770, 0.0
        %v773 = vmax.f32 %v771, 0.0
        %v776 = vcombine.low %v772, %v773
        %778 = vst [vmem:[%s284] sm:$0x77] %v776
        %s779 = sand.u32 %s181, 1
        %s780 = scalar_lea.sflag [#allocation3], %s779
        %s781 = sand.u32 %s181, 1
        %s782 = smul.addr %s781, 8
        %s783 = scalar_lea.vmem [#allocation2], %s782
        // Predicated region
        $region49: #{tpu_custom_call.1} parent=47 // pred_check
          %p784 = pneg %p191
        $region50: #{tpu_custom_call.1} parent=47 // pred_check_branch
          %786 = sbr.rel (%p784) target = $region52
        $region51: #{tpu_custom_call.1} parent=47 // pred_region
          %s787 = smul.u32 2, %s21
          %s788 = ssub.s32 3, %s787
          %p789 = scmp.lt.s32.totalorder %s788, 2
          %s790 = scalar_select %p789, %s788, 2
          %s791 = smul.u32 64, %s790
          %s793 = ssub.s32 128, %s791
          %794 = vsyncadd %s780, %s793
          %p795 = scmp.ne.s32.totalorder 0, %s791
          %s796 = smul.addr %s787, 64
          %s797 = scalar_lea.hbm %s7, %s796
          %s798 = smul.u32 %s790, 4
          %s799 = sshll.u32 %s798, 4
          %s800 = sshll.u32 %s783, 4
          %s801 = int_to_ptr.vmem [resolvable:$true] %s800
          %803 = dma.vmem_to_hbm [thread:$0]  (%p795), %s801, %s799, %s797, %s780
        $region52: #{tpu_custom_call.1} parent=47 // pred_fallthru
          _
      $region48: #{tpu_custom_call.1} parent=5 // pred_fallthru
        _
      %p804 = scmp.le.s32.totalorder 2, %s16
      // Predicated region
      $region53: #{tpu_custom_call.1} parent=5 // pred_check
        %p805 = pneg %p804
      $region54: #{tpu_custom_call.1} parent=5 // pred_check_branch
        %807 = sbr.rel (%p805) target = $region56
      $region55: #{tpu_custom_call.1} parent=5 // pred_region
        %s808 = ssub.s32 %s16, 2
        // Predicated region
        $region57: #{tpu_custom_call.1} parent=55 // pred_check
          %p809 = pneg %p197
        $region58: #{tpu_custom_call.1} parent=55 // pred_check_branch
          %811 = sbr.rel (%p809) target = $region60
        $region59: #{tpu_custom_call.1} parent=55 // pred_region
          %s812 = sand.u32 %s182, 1
          %s813 = scalar_lea.sflag [#allocation3], %s812
          %s814 = sand.u32 %s182, 1
          %s815 = smul.addr %s814, 8
          %s816 = scalar_lea.vmem [#allocation2], %s815
          %817 = dma.done %s813, 128
        $region60: #{tpu_custom_call.1} parent=55 // pred_fallthru
          _
      $region56: #{tpu_custom_call.1} parent=5 // pred_fallthru
        _
    $region6: #{tpu_custom_call.1} parent=1 // loop_footer
      %s20 = sadd.s32 1, %s16
    $region7: #{tpu_custom_call.1} parent=1 // loop_footer_branch
      %15 = sbr.rel target = $region3
    $region8: #{tpu_custom_call.1} parent=1 // loop_exit
      _
    %818 = vsyncpa [#allocation3], 1
    %s819 = scalar_lea.sflag [#allocation3], 1
    %820 = vsyncpa %s819, 1

</llo_original>
